<compile_context>
chip_gen: v5e
topology: v5e:2x2
jax: 0.10.0
libtpu: 0.0.40
codegen_flags: <defaults>
</compile_context>

<pallas_src>
import math

import jax
import jax.numpy as jnp
from jax.experimental import pallas as pl
from jax.experimental.pallas import tpu as pltpu


# Packed parameter column order (already transformed in the wrapper):
#   0: softplus(h1)  1: b1  2: tanh(a1)
#   3: softplus(h2)  4: b2  5: tanh(a2)
#   6: softplus(h3)  7: b3  8: tanh(a3)
#   9: softplus(h4) 10: b4
_NUM_PACKED = 11


def _bit_estimator_kernel(x_ref, p_ref, o_ref):
    x = x_ref[...].astype(jnp.float32)          # (TR, TL)
    p = p_ref[...].astype(jnp.float32)          # (TR, 11)

    def col(i):
        return p[:, i:i + 1]                    # (TR, 1) -> broadcasts over lanes

    # Three non-final Bitparm stages: x = x*softplus(h)+b ; x += tanh(x)*tanh(a)
    for s in range(3):
        x = x * col(3 * s) + col(3 * s + 1)
        x = x + jnp.tanh(x) * col(3 * s + 2)

    # Final stage: sigmoid(x*softplus(h4)+b4) (a4 unused, as in Bitparm(final=True)).
    # sigmoid(z) == 0.5*(tanh(0.5*z)+1): one EUP push instead of exp + reciprocal.
    z = x * col(9) + col(10)
    x = 0.5 * (jnp.tanh(0.5 * z) + 1.0)

    o_ref[...] = x.astype(o_ref.dtype)


def _round_down(v, m):
    return (v // m) * m


def _choose_tiles(rows, lanes, bytes_per_elem, target_bytes=4 << 20):
    """Pick (row_tile, lane_tile) with block size ~target_bytes.

    Row tile is a multiple of 8 (or full extent); lane tile is a multiple of
    128 (or full extent).  Guarantees >= 2 total grid steps when the problem
    is splittable so megacore (v7x: 2 TensorCores) can shard the grid.
    """
    tr, tl = rows, lanes

    def blk(r, l):
        return r * l * bytes_per_elem

    # Shrink the lane dim first (keeps sublanes fully occupied).
    if blk(tr, tl) > target_bytes and lanes > 128:
        budget = max(128, _round_down(target_bytes // (bytes_per_elem * tr), 128))
        tl = min(budget, _round_down(lanes, 128))

    # Shrink the row (batch*channel) dim if a single lane-tile column is still
    # over budget (very large C) -- prevents scoped-VMEM blowup.
    if blk(tr, tl) > target_bytes and rows > 8:
        budget = max(8, _round_down(target_bytes // (bytes_per_elem * tl), 8))
        tr = max(8, min(budget, _round_down(rows, 8)))

    # Megacore: ensure >= 2 grid steps when we can split cleanly.
    if pl.cdiv(rows, tr) * pl.cdiv(lanes, tl) < 2:
        if lanes >= 256:
            tl = max(128, _round_down(lanes // 2, 128))
        elif rows >= 16:
            tr = max(8, _round_down(rows // 2, 8))

    return tr, tl


def bit_estimator_forward(x_nchw, params, *, target_block_bytes=4 << 20):
    """x_nchw: (N, C, H, W).  params: dict of (C,) vectors (h1..h4, b1..b4, a1..a4)."""
    N, C, H, W = x_nchw.shape
    HW = H * W

    # Transform per-channel params once on tiny (C,) vectors, pack to (C, 11).
    cols = []
    for i in (1, 2, 3):
        cols.append(jax.nn.softplus(params[f"h{i}"]))
        cols.append(params[f"b{i}"])
        cols.append(jnp.tanh(params[f"a{i}"]))
    cols.append(jax.nn.softplus(params["h4"]))
    cols.append(params["b4"])
    packed = jnp.stack(cols, axis=1).astype(jnp.float32)      # (C, 11)

    # Fold batch (and, when needed, a spatial factor S) into the row axis so
    # the sublane dimension is a multiple of 8.  Row r covers channel
    # (r // S) % C; the reshape is a free flat-view reinterpretation.
    S = 1
    if (N * C) % 8 != 0:
        cand = 8 // math.gcd(N * C, 8)
        if cand > 1 and HW % cand == 0 and HW // cand >= 128:
            S = cand
    rows, lanes = N * C * S, HW // S

    x2d = x_nchw.reshape(rows, lanes)
    p2d = jnp.tile(jnp.repeat(packed, S, axis=0), (N, 1))      # (rows, 11), tiny

    bpe = jnp.dtype(x_nchw.dtype).itemsize
    tr, tl = _choose_tiles(rows, lanes, bpe, target_block_bytes)
    grid = (pl.cdiv(rows, tr), pl.cdiv(lanes, tl))

    x_spec = pl.BlockSpec((tr, tl), lambda i, j: (i, j))
    p_spec = pl.BlockSpec((tr, _NUM_PACKED), lambda i, j: (i, 0))

    # Scoped VMEM: double-buffered in + out + params, plus slack.
    blk_bytes = tr * tl * bpe
    p_bytes = tr * _NUM_PACKED * 4
    vmem_limit = int(2 * (2 * blk_bytes + p_bytes) + (4 << 20))

    out2d = pl.pallas_call(
        _bit_estimator_kernel,
        out_shape=jax.ShapeDtypeStruct((rows, lanes), x_nchw.dtype),
        grid_spec=pltpu.PrefetchScalarGridSpec(
            num_scalar_prefetch=0,
            grid=grid,
            in_specs=[x_spec, p_spec],
            out_specs=x_spec,
        ),
        compiler_params=pltpu.CompilerParams(
            dimension_semantics=("parallel", "parallel"),
            vmem_limit_bytes=vmem_limit,
        ),
    )(x2d, p2d)

    return out2d.reshape(N, C, H, W)


def init_params(channel, key):
    """Deterministic init mirroring torch.nn.init.normal_(..., 0, 0.01)."""
    names = ["h1", "b1", "a1", "h2", "b2", "a2", "h3", "b3", "a3",
             "h4", "b4", "a4"]
    keys = jax.random.split(key, len(names))
    return {
        n: 0.01 * jax.random.normal(k, (channel,), dtype=jnp.float32)
        for n, k in zip(names, keys)
    }


def bit_estimator_reference(x_nchw, params):
    """Plain-JAX reference for correctness checking."""
    def p(name):
        return params[name].reshape(1, -1, 1, 1)

    x = x_nchw
    for i in (1, 2, 3):
        x = x * jax.nn.softplus(p(f"h{i}")) + p(f"b{i}")
        x = x + jnp.tanh(x) * jnp.tanh(p(f"a{i}"))
    return jax.nn.sigmoid(x * jax.nn.softplus(p("h4")) + p("b4"))


if __name__ == "__main__":
    key = jax.random.PRNGKey(0)
    k_x, k_p = jax.random.split(key)

    N, C, H, W = 2, 4, 16, 16
    x = jax.random.normal(k_x, (N, C, H, W), dtype=jnp.float32)
    params = init_params(C, k_p)

    out = bit_estimator_forward(x, params)
    out = jax.block_until_ready(out)

    ref = bit_estimator_reference(x, params)
    assert out.shape == (N, C, H, W)
    assert jnp.allclose(out, ref, atol=1e-5, rtol=1e-5), "mismatch vs reference"

    print("KERNEL_OK")
</pallas_src>

<mosaic_0001>
module attributes {stable_mosaic.version = 11 : i64} {
  func.func @_bit_estimator_kernel(%arg0: i32, %arg1: i32, %arg2: memref<8x128xf32, #tpu.memory_space<vmem>>, %arg3: memref<8x11xf32, #tpu.memory_space<vmem>>, %arg4: memref<8x128xf32, #tpu.memory_space<vmem>>) attributes {dimension_semantics = [#tpu.dimension_semantics<parallel>, #tpu.dimension_semantics<parallel>], iteration_bounds = array<i64: 1, 2>, scalar_prefetch = 0 : i64, scratch_operands = 0 : i64, tpu.core_type = #tpu.core_type<tc>, window_params = [{transform_indices = @transform_0, window_bounds = array<i64: 8, 128>}, {transform_indices = @transform_1, window_bounds = array<i64: 8, 11>}, {transform_indices = @transform_2, window_bounds = array<i64: 8, 128>}]} {
    %c0 = arith.constant 0 : index
    %c0_0 = arith.constant 0 : index
    %0 = vector.load %arg2[%c0, %c0_0] : memref<8x128xf32, #tpu.memory_space<vmem>>, vector<8x128xf32>
    %c0_1 = arith.constant 0 : index
    %c0_2 = arith.constant 0 : index
    %1 = vector.load %arg3[%c0_1, %c0_2] : memref<8x11xf32, #tpu.memory_space<vmem>>, vector<8x11xf32>
    %2 = vector.extract_strided_slice %1 {offsets = [0, 0], sizes = [8, 1], strides = [1, 1]} : vector<8x11xf32> to vector<8x1xf32>
    %3 = vector.broadcast %2 : vector<8x1xf32> to vector<8x128xf32>
    %4 = arith.mulf %0, %3 : vector<8x128xf32>
    %5 = vector.extract_strided_slice %1 {offsets = [0, 1], sizes = [8, 1], strides = [1, 1]} : vector<8x11xf32> to vector<8x1xf32>
    %6 = vector.broadcast %5 : vector<8x1xf32> to vector<8x128xf32>
    %7 = arith.addf %4, %6 : vector<8x128xf32>
    %8 = math.tanh %7 : vector<8x128xf32>
    %9 = vector.extract_strided_slice %1 {offsets = [0, 2], sizes = [8, 1], strides = [1, 1]} : vector<8x11xf32> to vector<8x1xf32>
    %10 = vector.broadcast %9 : vector<8x1xf32> to vector<8x128xf32>
    %11 = arith.mulf %8, %10 : vector<8x128xf32>
    %12 = arith.addf %7, %11 : vector<8x128xf32>
    %13 = vector.extract_strided_slice %1 {offsets = [0, 3], sizes = [8, 1], strides = [1, 1]} : vector<8x11xf32> to vector<8x1xf32>
    %14 = vector.broadcast %13 : vector<8x1xf32> to vector<8x128xf32>
    %15 = arith.mulf %12, %14 : vector<8x128xf32>
    %16 = vector.extract_strided_slice %1 {offsets = [0, 4], sizes = [8, 1], strides = [1, 1]} : vector<8x11xf32> to vector<8x1xf32>
    %17 = vector.broadcast %16 : vector<8x1xf32> to vector<8x128xf32>
    %18 = arith.addf %15, %17 : vector<8x128xf32>
    %19 = math.tanh %18 : vector<8x128xf32>
    %20 = vector.extract_strided_slice %1 {offsets = [0, 5], sizes = [8, 1], strides = [1, 1]} : vector<8x11xf32> to vector<8x1xf32>
    %21 = vector.broadcast %20 : vector<8x1xf32> to vector<8x128xf32>
    %22 = arith.mulf %19, %21 : vector<8x128xf32>
    %23 = arith.addf %18, %22 : vector<8x128xf32>
    %24 = vector.extract_strided_slice %1 {offsets = [0, 6], sizes = [8, 1], strides = [1, 1]} : vector<8x11xf32> to vector<8x1xf32>
    %25 = vector.broadcast %24 : vector<8x1xf32> to vector<8x128xf32>
    %26 = arith.mulf %23, %25 : vector<8x128xf32>
    %27 = vector.extract_strided_slice %1 {offsets = [0, 7], sizes = [8, 1], strides = [1, 1]} : vector<8x11xf32> to vector<8x1xf32>
    %28 = vector.broadcast %27 : vector<8x1xf32> to vector<8x128xf32>
    %29 = arith.addf %26, %28 : vector<8x128xf32>
    %30 = math.tanh %29 : vector<8x128xf32>
    %31 = vector.extract_strided_slice %1 {offsets = [0, 8], sizes = [8, 1], strides = [1, 1]} : vector<8x11xf32> to vector<8x1xf32>
    %32 = vector.broadcast %31 : vector<8x1xf32> to vector<8x128xf32>
    %33 = arith.mulf %30, %32 : vector<8x128xf32>
    %34 = arith.addf %29, %33 : vector<8x128xf32>
    %35 = vector.extract_strided_slice %1 {offsets = [0, 9], sizes = [8, 1], strides = [1, 1]} : vector<8x11xf32> to vector<8x1xf32>
    %36 = vector.broadcast %35 : vector<8x1xf32> to vector<8x128xf32>
    %37 = arith.mulf %34, %36 : vector<8x128xf32>
    %38 = vector.extract_strided_slice %1 {offsets = [0, 10], sizes = [8, 1], strides = [1, 1]} : vector<8x11xf32> to vector<8x1xf32>
    %39 = vector.broadcast %38 : vector<8x1xf32> to vector<8x128xf32>
    %40 = arith.addf %37, %39 : vector<8x128xf32>
    %cst = arith.constant 5.000000e-01 : f32
    %41 = vector.broadcast %cst : f32 to vector<8x128xf32>
    %42 = arith.mulf %41, %40 : vector<8x128xf32>
    %43 = math.tanh %42 : vector<8x128xf32>
    %cst_3 = arith.constant 1.000000e+00 : f32
    %44 = vector.broadcast %cst_3 : f32 to vector<8x128xf32>
    %45 = arith.addf %43, %44 : vector<8x128xf32>
    %cst_4 = arith.constant 5.000000e-01 : f32
    %46 = vector.broadcast %cst_4 : f32 to vector<8x128xf32>
    %47 = arith.mulf %46, %45 : vector<8x128xf32>
    %c0_5 = arith.constant 0 : index
    %c0_6 = arith.constant 0 : index
    %48 = vector.load %arg4[%c0_5, %c0_6] : memref<8x128xf32, #tpu.memory_space<vmem>>, vector<8x128xf32>
    tpu.vector_store %arg4[%c0_5, %c0_6], %47 {strides = array<i32>} : memref<8x128xf32, #tpu.memory_space<vmem>>, vector<8x128xf32>,
    return
  }
  func.func @transform_0(%arg0: i32, %arg1: i32) -> (i32, i32) {
    %c0_i32 = arith.constant 0 : i32
    return %arg0, %arg1 : i32, i32
  }
  func.func @transform_1(%arg0: i32, %arg1: i32) -> (i32, i32) {
    %c0_i32 = arith.constant 0 : i32
    %c0_i32_0 = arith.constant 0 : i32
    return %arg0, %c0_i32 : i32, i32
  }
  func.func @transform_2(%arg0: i32, %arg1: i32) -> (i32, i32) {
    %c0_i32 = arith.constant 0 : i32
    return %arg0, %arg1 : i32, i32
  }
}

</mosaic_0001>

<llo_original>
// kernel: tpu_custom_call.1
$region0: #{tpu_custom_call.1}
  #allocation0 [shape = 'u32[]', space=smem, size = 0x4, offset = 0x4, fixed_abs, tag = 'smem constant byte address 0x4 - core index']
  #allocation1 [shape = 'u32[72,128]{1,0:T(1,128)}', space=vmem, size = 0x9000, scoped, tag = 'internal scratch']
  %s0 = inlined_call_operand.hbm [shape: f32[8,256], index: 0, kind: input, shape index: {}]
  %s1 = inlined_call_operand.hbm [shape: f32[8,11], index: 1, kind: input, shape index: {}]
  %s2 = inlined_call_operand.hbm [shape: f32[8,256], index: 2, kind: output, shape index: {}]
  %s3 = sld [smem:[#allocation0]]
  $region49: #{tpu_custom_call.1} parent=0
    _
  %s5 = ssub.s32 1, %s3
  %s6 = scalar_select 0, %s5, %s3
  $region1: #{tpu_custom_call.1} parent=0
    #allocation2 [shape = 'u8[8192]{0}', space=vmem, size = 0x2000, scoped, tag = 'input window, operand 0']
    #allocation3 [shape = 's32[2]{0}', space=sflag, size = 0x8, scoped, tag = 'scoped memory for tpu_custom_call.1']
    #allocation4 [shape = 's32[2]{0}', space=sflag, size = 0x8, scoped, tag = 'scoped memory for tpu_custom_call.1']
    #allocation5 [shape = 'u8[4096]{0}', space=vmem, size = 0x1000, scoped, tag = 'input window, operand 1, single buffered']
    #allocation6 [shape = 's32[1]{0}', space=sflag, size = 0x4, scoped, tag = 'scoped memory for tpu_custom_call.1']
    #allocation7 [shape = 'u8[8192]{0}', space=vmem, size = 0x2000, scoped, tag = 'output window, operand 0']
    %7 = vsyncpa [#allocation3], 0
    %s8 = scalar_lea.sflag [#allocation3], 1
    %9 = vsyncpa %s8, 0
    %10 = vsyncpa [#allocation6], 0
    %11 = vsyncpa [#allocation4], 0
    %s12 = scalar_lea.sflag [#allocation4], 1
    %13 = vsyncpa %s12, 0
    loop: start=0, step=1, limit=4
    $region2: #{tpu_custom_call.1} parent=1 // loop_pre_header
      _
    $region3: #{tpu_custom_call.1} parent=1 // loop_header
      %s15 = sphi 0, %s19
      %p16 = scmp.ge.s32.totalorder %s15, 4
      %s22 = sphi 0, %s34
      %s23 = sphi 0, %s30
      %s24 = sphi 0, %s22
      %s25 = sphi 0, %s23
      %s26 = sphi 0, %s24
      %s27 = sphi 0, %s25
      %s39 = sphi 0, %s41
      %s42 = sphi 0, %s39
      %s43 = sphi 0, %s42
      %s59 = sphi 0, %s43
      %s65 = sphi 0, %s67
      %s68 = sphi 0, %s65
      %s69 = sphi 0, %s68
      %s85 = sphi 0, %s69
      %s93 = sphi 0, %s95
      %s96 = sphi 0, %s93
      %s97 = sphi 0, %s96
      %s113 = sphi 0, %s97
    $region4: #{tpu_custom_call.1} parent=1 // loop_header_branch
      %18 = sbr.rel (%p16) target = $region8
    $region5: #{tpu_custom_call.1} parent=1 // loop_body
      %s20 = ssub.s32 %s15, 1
      %s21 = ssub.s32 %s15, 2
      %s28 = sadd.s32 1, %s23
      %p29 = scmp.ge.s32.totalorder %s28, 2
      %s30 = scalar_select %p29, 0, %s28
      %s31 = sadd.s32 1, %s22
      %s32 = scalar_select %p29, %s31, %s22
      %p33 = scmp.ge.s32.totalorder %s32, 1
      %s34 = scalar_select %p33, 0, %s32
      %s35 = ssub.s32 %s22, %s34
      %s36 = ssub.s32 %s23, %s30
      %s37 = sor.u32 %s35, %s36
      %p38 = scmp.eq.s32.totalorder %s37, 0
      %s40 = sadd.s32 %s39, 1
      %s41 = scalar_select %p38, %s39, %s40
      %p44 = pneg %p38
      %p45 = scmp.eq.s32.totalorder %s15, 1
      %p46 = por %p44, %p45
      %p47 = scmp.ne.s32.totalorder %s39, %s42
      %p48 = scmp.eq.s32.totalorder %s15, 0
      %p49 = por %p47, %p48
      %p50 = scmp.ne.s32.totalorder %s39, %s42
      %p51 = scmp.eq.s32.totalorder %s20, 1
      %p52 = por %p50, %p51
      %p53 = scmp.ne.s32.totalorder %s42, %s43
      %p54 = scmp.eq.s32.totalorder %s20, 0
      %p55 = por %p53, %p54
      %p56 = scmp.ne.s32.totalorder %s42, %s43
      %p57 = scmp.eq.s32.totalorder %s21, 1
      %p58 = por %p56, %p57
      %p60 = scmp.ne.s32.totalorder %s43, %s59
      %p61 = scmp.eq.s32.totalorder %s21, 0
      %p62 = por %p60, %p61
      %s63 = ssub.s32 %s22, %s34
      %p64 = scmp.eq.s32.totalorder %s63, 0
      %s66 = sadd.s32 %s65, 1
      %s67 = scalar_select %p64, %s65, %s66
      %p70 = pneg %p64
      %p71 = scmp.eq.s32.totalorder %s15, 1
      %p72 = por %p70, %p71
      %p73 = scmp.ne.s32.totalorder %s65, %s68
      %p74 = scmp.eq.s32.totalorder %s15, 0
      %p75 = por %p73, %p74
      %p76 = scmp.ne.s32.totalorder %s65, %s68
      %p77 = scmp.eq.s32.totalorder %s20, 1
      %p78 = por %p76, %p77
      %p79 = scmp.ne.s32.totalorder %s68, %s69
      %p80 = scmp.eq.s32.totalorder %s20, 0
      %p81 = por %p79, %p80
      %p82 = scmp.ne.s32.totalorder %s68, %s69
      %p83 = scmp.eq.s32.totalorder %s21, 1
      %p84 = por %p82, %p83
      %p86 = scmp.ne.s32.totalorder %s69, %s85
      %p87 = scmp.eq.s32.totalorder %s21, 0
      %p88 = por %p86, %p87
      %s89 = ssub.s32 %s22, %s34
      %s90 = ssub.s32 %s23, %s30
      %s91 = sor.u32 %s89, %s90
      %p92 = scmp.eq.s32.totalorder %s91, 0
      %s94 = sadd.s32 %s93, 1
      %s95 = scalar_select %p92, %s93, %s94
      %p98 = pneg %p92
      %p99 = scmp.eq.s32.totalorder %s15, 1
      %p100 = por %p98, %p99
      %p101 = scmp.ne.s32.totalorder %s93, %s96
      %p102 = scmp.eq.s32.totalorder %s15, 0
      %p103 = por %p101, %p102
      %p104 = scmp.ne.s32.totalorder %s93, %s96
      %p105 = scmp.eq.s32.totalorder %s20, 1
      %p106 = por %p104, %p105
      %p107 = scmp.ne.s32.totalorder %s96, %s97
      %p108 = scmp.eq.s32.totalorder %s20, 0
      %p109 = por %p107, %p108
      %p110 = scmp.ne.s32.totalorder %s96, %s97
      %p111 = scmp.eq.s32.totalorder %s21, 1
      %p112 = por %p110, %p111
      %p114 = scmp.ne.s32.totalorder %s97, %s113
      %p115 = scmp.eq.s32.totalorder %s21, 0
      %p116 = por %p114, %p115
      %p117 = scmp.le.s32.totalorder 1, %s15
      %p118 = scmp.lt.s32.totalorder %s15, 3
      %p119 = pnand %p117, %p118
      %p120 = pneg %p119
      // Predicated region
      $region9: #{tpu_custom_call.1} parent=5 // pred_check
        _
      $region10: #{tpu_custom_call.1} parent=5 // pred_check_branch
        %122 = sbr.rel (%p119) target = $region12
      $region11: #{tpu_custom_call.1} parent=5 // pred_region
        %s123 = ssub.s32 %s15, 1
        // Predicated region
        $region13: #{tpu_custom_call.1} parent=11 // pred_check
          %p124 = pneg %p81
        $region14: #{tpu_custom_call.1} parent=11 // pred_check_branch
          %126 = sbr.rel (%p124) target = $region16
        $region15: #{tpu_custom_call.1} parent=11 // pred_region
          %128 = vsyncadd [#allocation6], 0
          %s129 = smul.addr %s24, 8
          %s130 = scalar_lea.hbm %s1, %s129
          %s132 = sshll.u32 %s130, 4
          %s133 = int_to_ptr.hbm [resolvable:$true] %s132
          %s134 = sshll.u32 [#allocation5], 4
          %s135 = int_to_ptr.vmem [resolvable:$true] %s134
          %137 = dma.hbm_to_vmem [thread:$0]  %s133, 128, %s135, [#allocation6]
        $region16: #{tpu_custom_call.1} parent=11 // pred_fallthru
          _
      $region12: #{tpu_custom_call.1} parent=5 // pred_fallthru
        _
      %p138 = scmp.lt.s32.totalorder %s15, 2
      // Predicated region
      $region17: #{tpu_custom_call.1} parent=5 // pred_check
        %p139 = pneg %p138
      $region18: #{tpu_custom_call.1} parent=5 // pred_check_branch
        %141 = sbr.rel (%p139) target = $region20
      $region19: #{tpu_custom_call.1} parent=5 // pred_region
        // Predicated region
        $region21: #{tpu_custom_call.1} parent=19 // pred_check
          %p142 = pneg %p49
        $region22: #{tpu_custom_call.1} parent=19 // pred_check_branch
          %144 = sbr.rel (%p142) target = $region24
        $region23: #{tpu_custom_call.1} parent=19 // pred_region
          %s145 = sand.u32 %s39, 1
          %s146 = scalar_lea.sflag [#allocation3], %s145
          %s147 = sand.u32 %s39, 1
          %s148 = smul.addr %s147, 8
          %s149 = scalar_lea.vmem [#allocation2], %s148
          %151 = vsyncadd %s146, 0
          %s152 = smul.addr %s22, 2
          %s153 = sadd.s32 %s23, %s152
          %s154 = smul.addr %s153, 8
          %s155 = scalar_lea.hbm %s0, %s154
          %s157 = sshll.u32 %s155, 4
          %s158 = int_to_ptr.hbm [resolvable:$true] %s157
          %s159 = sshll.u32 %s149, 4
          %s160 = int_to_ptr.vmem [resolvable:$true] %s159
          %162 = dma.hbm_to_vmem [thread:$0]  %s158, 128, %s160, %s146
        $region24: #{tpu_custom_call.1} parent=19 // pred_fallthru
          _
      $region20: #{tpu_custom_call.1} parent=5 // pred_fallthru
        _
      %p163 = scmp.le.s32.totalorder 1, %s15
      %p164 = scmp.lt.s32.totalorder %s15, 3
      %p165 = pnand %p163, %p164
      %p166 = pneg %p165
      // Predicated region
      $region25: #{tpu_custom_call.1} parent=5 // pred_check
        _
      $region26: #{tpu_custom_call.1} parent=5 // pred_check_branch
        %168 = sbr.rel (%p165) target = $region28
      $region27: #{tpu_custom_call.1} parent=5 // pred_region
        %s169 = ssub.s32 %s15, 1
        %s170 = sand.u32 %s42, 1
        %s171 = scalar_lea.sflag [#allocation3], %s170
        %s172 = sand.u32 %s42, 1
        %s173 = smul.addr %s172, 8
        %s174 = scalar_lea.vmem [#allocation2], %s173
        // Predicated region
        $region29: #{tpu_custom_call.1} parent=27 // pred_check
          %p175 = pneg %p55
        $region30: #{tpu_custom_call.1} parent=27 // pred_check_branch
          %177 = sbr.rel (%p175) target = $region32
        $region31: #{tpu_custom_call.1} parent=27 // pred_region
          %179 = dma.done %s171, 128
        $region32: #{tpu_custom_call.1} parent=27 // pred_fallthru
          _
        // Predicated region
        $region33: #{tpu_custom_call.1} parent=27 // pred_check
          %p180 = pneg %p81
        $region34: #{tpu_custom_call.1} parent=27 // pred_check_branch
          %182 = sbr.rel (%p180) target = $region36
        $region35: #{tpu_custom_call.1} parent=27 // pred_region
          %184 = dma.done [#allocation6], 128
        $region36: #{tpu_custom_call.1} parent=27 // pred_fallthru
          _
        %s185 = sand.u32 %s42, 1
        %s186 = scalar_lea.sflag [#allocation3], %s185
        %s187 = sand.u32 %s42, 1
        %s188 = smul.addr %s187, 8
        %s189 = scalar_lea.vmem [#allocation2], %s188
        %p190 = pneg %p55
        %p191 = pneg %p52
        %p192 = pneg %p81
        %p193 = pneg %p78
        %p194 = pneg %p109
        %p195 = pneg %p106
        %s196 = sand.u32 %s96, 1
        %s197 = scalar_lea.sflag [#allocation4], %s196
        %s198 = sand.u32 %s96, 1
        %s199 = smul.addr %s198, 8
        %s200 = scalar_lea.vmem [#allocation7], %s199
        %v201 = vld [vmem:[%s174] sm:$0xff]
        %v202 = vld [vmem:[#allocation5] sm:$0xff]
        %204 = vset.pattern.permute.xlu0 0
        %205 = vperm.xlu0 %204, %v202
        %v206 = vpop.permute.xlu0 %205
        %v208 = vmul.f32 %v201, %v206
        %209 = vset.pattern.permute.xlu0 1
        %210 = vperm.xlu0 %209, %v202
        %v211 = vpop.permute.xlu0 %210
        %v213 = vadd.f32 %v208, %v211
        %v214 = vtanh.pop %v213
        %215 = vset.pattern.permute.xlu0 2
        %216 = vperm.xlu0 %215, %v202
        %v217 = vpop.permute.xlu0 %216
        %v219 = vmul.f32 %v214, %v217
        %v220 = vadd.f32 %v213, %v219
        %221 = vset.pattern.permute.xlu0 3
        %222 = vperm.xlu0 %221, %v202
        %v223 = vpop.permute.xlu0 %222
        %v225 = vmul.f32 %v220, %v223
        %226 = vset.pattern.permute.xlu0 4
        %227 = vperm.xlu0 %226, %v202
        %v228 = vpop.permute.xlu0 %227
        %v230 = vadd.f32 %v225, %v228
        %v231 = vtanh.pop %v230
        %232 = vset.pattern.permute.xlu0 5
        %233 = vperm.xlu0 %232, %v202
        %v234 = vpop.permute.xlu0 %233
        %v236 = vmul.f32 %v231, %v234
        %v237 = vadd.f32 %v230, %v236
        %238 = vset.pattern.permute.xlu0 6
        %239 = vperm.xlu0 %238, %v202
        %v240 = vpop.permute.xlu0 %239
        %v242 = vmul.f32 %v237, %v240
        %243 = vset.pattern.permute.xlu0 7
        %244 = vperm.xlu0 %243, %v202
        %v245 = vpop.permute.xlu0 %244
        %v247 = vadd.f32 %v242, %v245
        %v248 = vtanh.pop %v247
        %249 = vset.pattern.permute.xlu0 8
        %250 = vperm.xlu0 %249, %v202
        %v251 = vpop.permute.xlu0 %250
        %v253 = vmul.f32 %v248, %v251
        %v254 = vadd.f32 %v247, %v253
        %255 = vset.pattern.permute.xlu0 9
        %256 = vperm.xlu0 %255, %v202
        %v257 = vpop.permute.xlu0 %256
        %v259 = vmul.f32 %v254, %v257
        %260 = vset.pattern.permute.xlu0 10
        %261 = vperm.xlu0 %260, %v202
        %v262 = vpop.permute.xlu0 %261
        %v264 = vadd.f32 %v259, %v262
        %v265 = vmul.f32 %v264, 0.5
        %v266 = vtanh.pop %v265
        %v267 = vadd.f32 %v266, 1.0
        %v268 = vmul.f32 %v267, 0.5
        %269 = vst [vmem:[%s200] sm:$0xff] %v268
        %s270 = sand.u32 %s96, 1
        %s271 = scalar_lea.sflag [#allocation4], %s270
        %s272 = sand.u32 %s96, 1
        %s273 = smul.addr %s272, 8
        %s274 = scalar_lea.vmem [#allocation7], %s273
        // Predicated region
        $region37: #{tpu_custom_call.1} parent=27 // pred_check
          %p275 = pneg %p106
        $region38: #{tpu_custom_call.1} parent=27 // pred_check_branch
          %277 = sbr.rel (%p275) target = $region40
        $region39: #{tpu_custom_call.1} parent=27 // pred_region
          %279 = vsyncadd %s271, 0
          %s280 = smul.addr %s24, 2
          %s281 = sadd.s32 %s25, %s280
          %s282 = smul.addr %s281, 8
          %s283 = scalar_lea.hbm %s2, %s282
          %s285 = sshll.u32 %s274, 4
          %s286 = int_to_ptr.vmem [resolvable:$true] %s285
          %s287 = sshll.u32 %s283, 4
          %s288 = int_to_ptr.hbm [resolvable:$true] %s287
          %290 = dma.vmem_to_hbm [thread:$0]  %s286, 128, %s288, %s271
        $region40: #{tpu_custom_call.1} parent=27 // pred_fallthru
          _
      $region28: #{tpu_custom_call.1} parent=5 // pred_fallthru
        _
      %p291 = scmp.le.s32.totalorder 2, %s15
      // Predicated region
      $region41: #{tpu_custom_call.1} parent=5 // pred_check
        %p292 = pneg %p291
      $region42: #{tpu_custom_call.1} parent=5 // pred_check_branch
        %294 = sbr.rel (%p292) target = $region44
      $region43: #{tpu_custom_call.1} parent=5 // pred_region
        %s295 = ssub.s32 %s15, 2
        // Predicated region
        $region45: #{tpu_custom_call.1} parent=43 // pred_check
          %p296 = pneg %p112
        $region46: #{tpu_custom_call.1} parent=43 // pred_check_branch
          %298 = sbr.rel (%p296) target = $region48
        $region47: #{tpu_custom_call.1} parent=43 // pred_region
          %s299 = sand.u32 %s97, 1
          %s300 = scalar_lea.sflag [#allocation4], %s299
          %s301 = sand.u32 %s97, 1
          %s302 = smul.addr %s301, 8
          %s303 = scalar_lea.vmem [#allocation7], %s302
          %305 = dma.done %s300, 128
        $region48: #{tpu_custom_call.1} parent=43 // pred_fallthru
          _
      $region44: #{tpu_custom_call.1} parent=5 // pred_fallthru
        _
    $region6: #{tpu_custom_call.1} parent=1 // loop_footer
      %s19 = sadd.s32 1, %s15
    $region7: #{tpu_custom_call.1} parent=1 // loop_footer_branch
      %14 = sbr.rel target = $region3
    $region8: #{tpu_custom_call.1} parent=1 // loop_exit
      _
    %306 = vsyncpa [#allocation3], 1
    %s307 = scalar_lea.sflag [#allocation3], 1
    %308 = vsyncpa %s307, 1
    %309 = vsyncpa [#allocation6], 1
    %310 = vsyncpa [#allocation4], 1
    %s311 = scalar_lea.sflag [#allocation4], 1
    %312 = vsyncpa %s311, 1

</llo_original>
